<compile_context>
chip_gen: v7x
topology: tpu7x:2x2x1
jax: 0.10.0
libtpu: 0.0.40
codegen_flags: <defaults>
</compile_context>

<pallas_src>
import jax
import jax.numpy as jnp
from jax.experimental import pallas as pl
from jax.experimental.pallas import tpu as pltpu


def mlp_kernel(xt_ref, w0_ref, b0_ref, w1_ref, b1_ref, w2_ref, b2_ref, out_ref):
    """Fused 3-layer MLP on one (features, TB) batch tile, batch on lanes."""
    xt = xt_ref[...]                                         # (IN, TB)

    # f0 + relu : (H0, IN) @ (IN, TB) -> (H0, TB)
    h0 = jnp.dot(w0_ref[...], xt, preferred_element_type=jnp.float32) + b0_ref[...]
    h0 = jnp.maximum(h0, 0.0)

    # f1 + relu : (H1, H0) @ (H0, TB) -> (H1, TB)
    h1 = jnp.dot(w1_ref[...], h0, preferred_element_type=jnp.float32) + b1_ref[...]
    h1 = jnp.maximum(h1, 0.0)

    # f2 + identity : (OUT, H1) @ (H1, TB) -> (OUT, TB)
    yt = jnp.dot(w2_ref[...], h1, preferred_element_type=jnp.float32) + b2_ref[...]
    out_ref[...] = yt.astype(out_ref.dtype)


def simple_mlp_forward(x, params, *, tb=512):
    """x: (B, input_size) f32.

    params: dict with PyTorch-layout weights w{i}: (out, in) and biases
    b{i}: (out, 1), all float32. Returns (B, output_size) f32.
    """
    B, in_dim = x.shape
    out_dim = params["w2"].shape[0]

    # Transpose so batch is the lane axis; pad batch to a multiple of the tile.
    num_tiles = pl.cdiv(B, tb)
    b_pad = num_tiles * tb
    x_t = x.T                                                # (IN, B)
    if b_pad != B:
        x_t = jnp.pad(x_t, ((0, 0), (0, b_pad - B)))         # (IN, B_pad)

    # Weights/biases: constant block index -> stay VMEM-resident across steps.
    def resident(arr):
        return pl.BlockSpec(arr.shape, lambda i: (0, 0))

    y_t = pl.pallas_call(
        mlp_kernel,
        out_shape=jax.ShapeDtypeStruct((out_dim, b_pad), jnp.float32),
        grid=(num_tiles,),
        in_specs=[
            pl.BlockSpec((in_dim, tb), lambda i: (0, i)),    # x^T streams with i
            resident(params["w0"]), resident(params["b0"]),
            resident(params["w1"]), resident(params["b1"]),
            resident(params["w2"]), resident(params["b2"]),
        ],
        out_specs=pl.BlockSpec((out_dim, tb), lambda i: (0, i)),
        compiler_params=pltpu.CompilerParams(
            dimension_semantics=("parallel",),               # v7x: shard over 2 TCs
        ),
    )(x_t, params["w0"], params["b0"], params["w1"], params["b1"],
      params["w2"], params["b2"])

    # Back to (B, out) row-major, dropping batch padding.
    return y_t[:, :B].T


def init_params(key, input_size, nhidden, output_size):
    """PyTorch nn.Linear default init: U(-1/sqrt(fan_in), 1/sqrt(fan_in)).

    Weights kept in native (out_features, in_features) layout; biases (out, 1).
    """
    dims = [input_size] + list(nhidden) + [output_size]
    params = {}
    for i in range(len(dims) - 1):
        fan_in, fan_out = dims[i], dims[i + 1]
        key, kw, kb = jax.random.split(key, 3)
        bound = 1.0 / jnp.sqrt(jnp.float32(fan_in))
        params[f"w{i}"] = jax.random.uniform(
            kw, (fan_out, fan_in), jnp.float32, -bound, bound)
        params[f"b{i}"] = jax.random.uniform(
            kb, (fan_out, 1), jnp.float32, -bound, bound)
    return params


if __name__ == "__main__":
    INPUT_SIZE = 16
    NHIDDEN = [32, 32]
    OUTPUT_SIZE = 8
    BATCH = 600   # not a tile multiple: exercises padding + a 2-step grid

    key = jax.random.PRNGKey(0)
    key, kx = jax.random.split(key)
    x = jax.random.normal(kx, (BATCH, INPUT_SIZE), jnp.float32)
    params = init_params(key, INPUT_SIZE, NHIDDEN, OUTPUT_SIZE)

    y = simple_mlp_forward(x, params)
    jax.block_until_ready(y)

    # Pure-JAX reference with identical (PyTorch Linear) semantics.
    h = jnp.maximum(x @ params["w0"].T + params["b0"].T, 0.0)
    h = jnp.maximum(h @ params["w1"].T + params["b1"].T, 0.0)
    y_ref = h @ params["w2"].T + params["b2"].T

    assert y.shape == (BATCH, OUTPUT_SIZE)
    assert jnp.allclose(y, y_ref, atol=2e-5, rtol=2e-5)

    print("KERNEL_OK")
</pallas_src>

<mosaic_0001>
module attributes {stable_mosaic.version = 11 : i64} {
  func.func @mlp_kernel(%arg0: i32, %arg1: memref<16x512xf32, #tpu.memory_space<vmem>>, %arg2: memref<32x16xf32, #tpu.memory_space<vmem>>, %arg3: memref<32x1xf32, #tpu.memory_space<vmem>>, %arg4: memref<32x32xf32, #tpu.memory_space<vmem>>, %arg5: memref<32x1xf32, #tpu.memory_space<vmem>>, %arg6: memref<8x32xf32, #tpu.memory_space<vmem>>, %arg7: memref<8x1xf32, #tpu.memory_space<vmem>>, %arg8: memref<8x512xf32, #tpu.memory_space<vmem>>) attributes {dimension_semantics = [#tpu.dimension_semantics<parallel>], iteration_bounds = array<i64: 2>, scalar_prefetch = 0 : i64, scratch_operands = 0 : i64, tpu.core_type = #tpu.core_type<tc>, window_params = [{transform_indices = @transform_0, window_bounds = array<i64: 16, 512>}, {pipeline_mode = #tpu.pipeline_mode<synchronous>, transform_indices = @transform_1, window_bounds = array<i64: 32, 16>}, {pipeline_mode = #tpu.pipeline_mode<synchronous>, transform_indices = @transform_2, window_bounds = array<i64: 32, 1>}, {pipeline_mode = #tpu.pipeline_mode<synchronous>, transform_indices = @transform_3, window_bounds = array<i64: 32, 32>}, {pipeline_mode = #tpu.pipeline_mode<synchronous>, transform_indices = @transform_4, window_bounds = array<i64: 32, 1>}, {pipeline_mode = #tpu.pipeline_mode<synchronous>, transform_indices = @transform_5, window_bounds = array<i64: 8, 32>}, {pipeline_mode = #tpu.pipeline_mode<synchronous>, transform_indices = @transform_6, window_bounds = array<i64: 8, 1>}, {transform_indices = @transform_7, window_bounds = array<i64: 8, 512>}]} {
    %c0 = arith.constant 0 : index
    %c0_0 = arith.constant 0 : index
    %0 = vector.load %arg1[%c0, %c0_0] : memref<16x512xf32, #tpu.memory_space<vmem>>, vector<16x512xf32>
    %c0_1 = arith.constant 0 : index
    %c0_2 = arith.constant 0 : index
    %1 = vector.load %arg2[%c0_1, %c0_2] : memref<32x16xf32, #tpu.memory_space<vmem>>, vector<32x16xf32>
    %cst = arith.constant dense<0.000000e+00> : vector<32x512xf32>
    %2 = tpu.matmul %1, %0, %cst {dimension_numbers = #tpu.dot_dimension_numbers<[1], [0], [0], [1], [0, 0, 1, 1], [], []>} : vector<32x16xf32>, vector<16x512xf32>, vector<32x512xf32> -> vector<32x512xf32>
    %c0_3 = arith.constant 0 : index
    %c0_4 = arith.constant 0 : index
    %3 = vector.load %arg3[%c0_3, %c0_4] : memref<32x1xf32, #tpu.memory_space<vmem>>, vector<32x1xf32>
    %4 = vector.broadcast %3 : vector<32x1xf32> to vector<32x512xf32>
    %5 = arith.addf %2, %4 : vector<32x512xf32>
    %cst_5 = arith.constant 0.000000e+00 : f32
    %6 = vector.broadcast %cst_5 : f32 to vector<32x512xf32>
    %7 = arith.maximumf %5, %6 : vector<32x512xf32>
    %c0_6 = arith.constant 0 : index
    %c0_7 = arith.constant 0 : index
    %8 = vector.load %arg4[%c0_6, %c0_7] : memref<32x32xf32, #tpu.memory_space<vmem>>, vector<32x32xf32>
    %cst_8 = arith.constant dense<0.000000e+00> : vector<32x512xf32>
    %9 = tpu.matmul %8, %7, %cst_8 {dimension_numbers = #tpu.dot_dimension_numbers<[1], [0], [0], [1], [0, 0, 1, 1], [], []>} : vector<32x32xf32>, vector<32x512xf32>, vector<32x512xf32> -> vector<32x512xf32>
    %c0_9 = arith.constant 0 : index
    %c0_10 = arith.constant 0 : index
    %10 = vector.load %arg5[%c0_9, %c0_10] : memref<32x1xf32, #tpu.memory_space<vmem>>, vector<32x1xf32>
    %11 = vector.broadcast %10 : vector<32x1xf32> to vector<32x512xf32>
    %12 = arith.addf %9, %11 : vector<32x512xf32>
    %cst_11 = arith.constant 0.000000e+00 : f32
    %13 = vector.broadcast %cst_11 : f32 to vector<32x512xf32>
    %14 = arith.maximumf %12, %13 : vector<32x512xf32>
    %c0_12 = arith.constant 0 : index
    %c0_13 = arith.constant 0 : index
    %15 = vector.load %arg6[%c0_12, %c0_13] : memref<8x32xf32, #tpu.memory_space<vmem>>, vector<8x32xf32>
    %cst_14 = arith.constant dense<0.000000e+00> : vector<8x512xf32>
    %16 = tpu.matmul %15, %14, %cst_14 {dimension_numbers = #tpu.dot_dimension_numbers<[1], [0], [0], [1], [0, 0, 1, 1], [], []>} : vector<8x32xf32>, vector<32x512xf32>, vector<8x512xf32> -> vector<8x512xf32>
    %c0_15 = arith.constant 0 : index
    %c0_16 = arith.constant 0 : index
    %17 = vector.load %arg7[%c0_15, %c0_16] : memref<8x1xf32, #tpu.memory_space<vmem>>, vector<8x1xf32>
    %18 = vector.broadcast %17 : vector<8x1xf32> to vector<8x512xf32>
    %19 = arith.addf %16, %18 : vector<8x512xf32>
    %c0_17 = arith.constant 0 : index
    %c0_18 = arith.constant 0 : index
    %20 = vector.load %arg8[%c0_17, %c0_18] : memref<8x512xf32, #tpu.memory_space<vmem>>, vector<8x512xf32>
    tpu.vector_store %arg8[%c0_17, %c0_18], %19 {strides = array<i32>} : memref<8x512xf32, #tpu.memory_space<vmem>>, vector<8x512xf32>,
    return
  }
  func.func @transform_0(%arg0: i32) -> (i32, i32) {
    %c0_i32 = arith.constant 0 : i32
    %c0_i32_0 = arith.constant 0 : i32
    return %c0_i32, %arg0 : i32, i32
  }
  func.func @transform_1(%arg0: i32) -> (i32, i32) {
    %c0_i32 = arith.constant 0 : i32
    %c0_i32_0 = arith.constant 0 : i32
    %c0_i32_1 = arith.constant 0 : i32
    return %c0_i32, %c0_i32_0 : i32, i32
  }
  func.func @transform_2(%arg0: i32) -> (i32, i32) {
    %c0_i32 = arith.constant 0 : i32
    %c0_i32_0 = arith.constant 0 : i32
    %c0_i32_1 = arith.constant 0 : i32
    return %c0_i32, %c0_i32_0 : i32, i32
  }
  func.func @transform_3(%arg0: i32) -> (i32, i32) {
    %c0_i32 = arith.constant 0 : i32
    %c0_i32_0 = arith.constant 0 : i32
    %c0_i32_1 = arith.constant 0 : i32
    return %c0_i32, %c0_i32_0 : i32, i32
  }
  func.func @transform_4(%arg0: i32) -> (i32, i32) {
    %c0_i32 = arith.constant 0 : i32
    %c0_i32_0 = arith.constant 0 : i32
    %c0_i32_1 = arith.constant 0 : i32
    return %c0_i32, %c0_i32_0 : i32, i32
  }
  func.func @transform_5(%arg0: i32) -> (i32, i32) {
    %c0_i32 = arith.constant 0 : i32
    %c0_i32_0 = arith.constant 0 : i32
    %c0_i32_1 = arith.constant 0 : i32
    return %c0_i32, %c0_i32_0 : i32, i32
  }
  func.func @transform_6(%arg0: i32) -> (i32, i32) {
    %c0_i32 = arith.constant 0 : i32
    %c0_i32_0 = arith.constant 0 : i32
    %c0_i32_1 = arith.constant 0 : i32
    return %c0_i32, %c0_i32_0 : i32, i32
  }
  func.func @transform_7(%arg0: i32) -> (i32, i32) {
    %c0_i32 = arith.constant 0 : i32
    %c0_i32_0 = arith.constant 0 : i32
    return %c0_i32, %arg0 : i32, i32
  }
}

</mosaic_0001>

<llo_original>
// kernel: tpu_custom_call.1
$region0: #{tpu_custom_call.1}
  #allocation0 [shape = 'u32[]', space=smem, size = 0x4, offset = 0x4, fixed_abs, tag = 'smem constant byte address 0x4 - core index']
  #allocation1 [shape = 'u32[144,128]{1,0:T(1,128)}', space=vmem, size = 0x12000, scoped, tag = 'internal scratch']
  %s0 = inlined_call_operand.hbm [shape: f32[16,1024], index: 0, kind: input, shape index: {}]
  %s1 = inlined_call_operand.vmem [shape: f32[32,16], index: 1, kind: input, shape index: {}]
  %s2 = inlined_call_operand.vmem [shape: f32[32,1], index: 2, kind: input, shape index: {}]
  %s3 = inlined_call_operand.vmem [shape: f32[32,32], index: 3, kind: input, shape index: {}]
  %s4 = inlined_call_operand.vmem [shape: f32[32,1], index: 4, kind: input, shape index: {}]
  %s5 = inlined_call_operand.vmem [shape: f32[8,32], index: 5, kind: input, shape index: {}]
  %s6 = inlined_call_operand.vmem [shape: f32[8,1], index: 6, kind: input, shape index: {}]
  %s7 = inlined_call_operand.hbm [shape: f32[8,1024], index: 7, kind: output, shape index: {}]
  %s8 = sld [smem:[#allocation0]]
  $region65: #{tpu_custom_call.1} parent=0
    _
  %s10 = ssub.s32 1, %s8
  %s11 = scalar_select 0, %s10, %s8
  $region1: #{tpu_custom_call.1} parent=0
    #allocation2 [shape = 'u8[65536]{0}', space=vmem, size = 0x10000, scoped, tag = 'input window, operand 0']
    #allocation3 [shape = 's32[2]{0}', space=sflag, size = 0x8, scoped, tag = 'scoped memory for tpu_custom_call.1']
    #allocation4 [shape = 's32[2]{0}', space=sflag, size = 0x8, scoped, tag = 'scoped memory for tpu_custom_call.1']
    #allocation5 [shape = 'u8[32768]{0}', space=vmem, size = 0x8000, scoped, tag = 'output window, operand 0']
    %12 = vsyncpa [#allocation3], 0
    %s13 = scalar_lea.sflag [#allocation3], 1
    %14 = vsyncpa %s13, 0
    %15 = vsyncpa [#allocation4], 0
    %s16 = scalar_lea.sflag [#allocation4], 1
    %17 = vsyncpa %s16, 0
    loop: start=0, step=1, limit=4
    $region2: #{tpu_custom_call.1} parent=1 // loop_pre_header
      _
    $region3: #{tpu_custom_call.1} parent=1 // loop_header
      %s19 = sphi 0, %s23
      %p20 = scmp.ge.s32.totalorder %s19, 4
      %s29 = sphi 0, %s31
      %s32 = sphi 0, %s29
      %s33 = sphi 0, %s32
      %s49 = sphi 0, %s33
      %s53 = sphi 0, %s53
      %s55 = sphi 0, %s53
      %s56 = sphi 0, %s55
      %s70 = sphi 0, %s56
      %s74 = sphi 0, %s74
      %s76 = sphi 0, %s74
      %s77 = sphi 0, %s76
      %s91 = sphi 0, %s77
      %s95 = sphi 0, %s95
      %s97 = sphi 0, %s95
      %s98 = sphi 0, %s97
      %s112 = sphi 0, %s98
      %s116 = sphi 0, %s116
      %s118 = sphi 0, %s116
      %s119 = sphi 0, %s118
      %s133 = sphi 0, %s119
      %s137 = sphi 0, %s137
      %s139 = sphi 0, %s137
      %s140 = sphi 0, %s139
      %s154 = sphi 0, %s140
      %s158 = sphi 0, %s158
      %s160 = sphi 0, %s158
      %s161 = sphi 0, %s160
      %s175 = sphi 0, %s161
      %s181 = sphi 0, %s183
      %s184 = sphi 0, %s181
      %s185 = sphi 0, %s184
      %s201 = sphi 0, %s185
    $region4: #{tpu_custom_call.1} parent=1 // loop_header_branch
      %22 = sbr.rel (%p20) target = $region8
    $region5: #{tpu_custom_call.1} parent=1 // loop_body
      %s24 = ssub.s32 %s19, 1
      %s25 = ssub.s32 %s19, 2
      %s26 = sadd.s32 %s19, 1
      %s27 = ssub.s32 %s19, %s26
      %p28 = scmp.eq.s32.totalorder %s27, 0
      %s30 = sadd.s32 %s29, 1
      %s31 = scalar_select %p28, %s29, %s30
      %p34 = pneg %p28
      %p35 = scmp.eq.s32.totalorder %s19, 1
      %p36 = por %p34, %p35
      %p37 = scmp.ne.s32.totalorder %s29, %s32
      %p38 = scmp.eq.s32.totalorder %s19, 0
      %p39 = por %p37, %p38
      %p40 = scmp.ne.s32.totalorder %s29, %s32
      %p41 = scmp.eq.s32.totalorder %s24, 1
      %p42 = por %p40, %p41
      %p43 = scmp.ne.s32.totalorder %s32, %s33
      %p44 = scmp.eq.s32.totalorder %s24, 0
      %p45 = por %p43, %p44
      %p46 = scmp.ne.s32.totalorder %s32, %s33
      %p47 = scmp.eq.s32.totalorder %s25, 1
      %p48 = por %p46, %p47
      %p50 = scmp.ne.s32.totalorder %s33, %s49
      %p51 = scmp.eq.s32.totalorder %s25, 0
      %p52 = por %p50, %p51
      %s54 = sadd.s32 %s53, 1
      %p57 = scmp.eq.s32.totalorder %s19, 1
      %p58 = scmp.ne.s32.totalorder %s53, %s55
      %p59 = scmp.eq.s32.totalorder %s19, 0
      %p60 = por %p58, %p59
      %p61 = scmp.ne.s32.totalorder %s53, %s55
      %p62 = scmp.eq.s32.totalorder %s24, 1
      %p63 = por %p61, %p62
      %p64 = scmp.ne.s32.totalorder %s55, %s56
      %p65 = scmp.eq.s32.totalorder %s24, 0
      %p66 = por %p64, %p65
      %p67 = scmp.ne.s32.totalorder %s55, %s56
      %p68 = scmp.eq.s32.totalorder %s25, 1
      %p69 = por %p67, %p68
      %p71 = scmp.ne.s32.totalorder %s56, %s70
      %p72 = scmp.eq.s32.totalorder %s25, 0
      %p73 = por %p71, %p72
      %s75 = sadd.s32 %s74, 1
      %p78 = scmp.eq.s32.totalorder %s19, 1
      %p79 = scmp.ne.s32.totalorder %s74, %s76
      %p80 = scmp.eq.s32.totalorder %s19, 0
      %p81 = por %p79, %p80
      %p82 = scmp.ne.s32.totalorder %s74, %s76
      %p83 = scmp.eq.s32.totalorder %s24, 1
      %p84 = por %p82, %p83
      %p85 = scmp.ne.s32.totalorder %s76, %s77
      %p86 = scmp.eq.s32.totalorder %s24, 0
      %p87 = por %p85, %p86
      %p88 = scmp.ne.s32.totalorder %s76, %s77
      %p89 = scmp.eq.s32.totalorder %s25, 1
      %p90 = por %p88, %p89
      %p92 = scmp.ne.s32.totalorder %s77, %s91
      %p93 = scmp.eq.s32.totalorder %s25, 0
      %p94 = por %p92, %p93
      %s96 = sadd.s32 %s95, 1
      %p99 = scmp.eq.s32.totalorder %s19, 1
      %p100 = scmp.ne.s32.totalorder %s95, %s97
      %p101 = scmp.eq.s32.totalorder %s19, 0
      %p102 = por %p100, %p101
      %p103 = scmp.ne.s32.totalorder %s95, %s97
      %p104 = scmp.eq.s32.totalorder %s24, 1
      %p105 = por %p103, %p104
      %p106 = scmp.ne.s32.totalorder %s97, %s98
      %p107 = scmp.eq.s32.totalorder %s24, 0
      %p108 = por %p106, %p107
      %p109 = scmp.ne.s32.totalorder %s97, %s98
      %p110 = scmp.eq.s32.totalorder %s25, 1
      %p111 = por %p109, %p110
      %p113 = scmp.ne.s32.totalorder %s98, %s112
      %p114 = scmp.eq.s32.totalorder %s25, 0
      %p115 = por %p113, %p114
      %s117 = sadd.s32 %s116, 1
      %p120 = scmp.eq.s32.totalorder %s19, 1
      %p121 = scmp.ne.s32.totalorder %s116, %s118
      %p122 = scmp.eq.s32.totalorder %s19, 0
      %p123 = por %p121, %p122
      %p124 = scmp.ne.s32.totalorder %s116, %s118
      %p125 = scmp.eq.s32.totalorder %s24, 1
      %p126 = por %p124, %p125
      %p127 = scmp.ne.s32.totalorder %s118, %s119
      %p128 = scmp.eq.s32.totalorder %s24, 0
      %p129 = por %p127, %p128
      %p130 = scmp.ne.s32.totalorder %s118, %s119
      %p131 = scmp.eq.s32.totalorder %s25, 1
      %p132 = por %p130, %p131
      %p134 = scmp.ne.s32.totalorder %s119, %s133
      %p135 = scmp.eq.s32.totalorder %s25, 0
      %p136 = por %p134, %p135
      %s138 = sadd.s32 %s137, 1
      %p141 = scmp.eq.s32.totalorder %s19, 1
      %p142 = scmp.ne.s32.totalorder %s137, %s139
      %p143 = scmp.eq.s32.totalorder %s19, 0
      %p144 = por %p142, %p143
      %p145 = scmp.ne.s32.totalorder %s137, %s139
      %p146 = scmp.eq.s32.totalorder %s24, 1
      %p147 = por %p145, %p146
      %p148 = scmp.ne.s32.totalorder %s139, %s140
      %p149 = scmp.eq.s32.totalorder %s24, 0
      %p150 = por %p148, %p149
      %p151 = scmp.ne.s32.totalorder %s139, %s140
      %p152 = scmp.eq.s32.totalorder %s25, 1
      %p153 = por %p151, %p152
      %p155 = scmp.ne.s32.totalorder %s140, %s154
      %p156 = scmp.eq.s32.totalorder %s25, 0
      %p157 = por %p155, %p156
      %s159 = sadd.s32 %s158, 1
      %p162 = scmp.eq.s32.totalorder %s19, 1
      %p163 = scmp.ne.s32.totalorder %s158, %s160
      %p164 = scmp.eq.s32.totalorder %s19, 0
      %p165 = por %p163, %p164
      %p166 = scmp.ne.s32.totalorder %s158, %s160
      %p167 = scmp.eq.s32.totalorder %s24, 1
      %p168 = por %p166, %p167
      %p169 = scmp.ne.s32.totalorder %s160, %s161
      %p170 = scmp.eq.s32.totalorder %s24, 0
      %p171 = por %p169, %p170
      %p172 = scmp.ne.s32.totalorder %s160, %s161
      %p173 = scmp.eq.s32.totalorder %s25, 1
      %p174 = por %p172, %p173
      %p176 = scmp.ne.s32.totalorder %s161, %s175
      %p177 = scmp.eq.s32.totalorder %s25, 0
      %p178 = por %p176, %p177
      %s179 = ssub.s32 %s19, %s26
      %p180 = scmp.eq.s32.totalorder %s179, 0
      %s182 = sadd.s32 %s181, 1
      %s183 = scalar_select %p180, %s181, %s182
      %p186 = pneg %p180
      %p187 = scmp.eq.s32.totalorder %s19, 1
      %p188 = por %p186, %p187
      %p189 = scmp.ne.s32.totalorder %s181, %s184
      %p190 = scmp.eq.s32.totalorder %s19, 0
      %p191 = por %p189, %p190
      %p192 = scmp.ne.s32.totalorder %s181, %s184
      %p193 = scmp.eq.s32.totalorder %s24, 1
      %p194 = por %p192, %p193
      %p195 = scmp.ne.s32.totalorder %s184, %s185
      %p196 = scmp.eq.s32.totalorder %s24, 0
      %p197 = por %p195, %p196
      %p198 = scmp.ne.s32.totalorder %s184, %s185
      %p199 = scmp.eq.s32.totalorder %s25, 1
      %p200 = por %p198, %p199
      %p202 = scmp.ne.s32.totalorder %s185, %s201
      %p203 = scmp.eq.s32.totalorder %s25, 0
      %p204 = por %p202, %p203
      %p205 = scmp.le.s32.totalorder 1, %s19
      %p206 = scmp.lt.s32.totalorder %s19, 3
      %p207 = pnand %p205, %p206
      %p208 = pneg %p207
      // Predicated region
      $region9: #{tpu_custom_call.1} parent=5 // pred_check
        _
      $region10: #{tpu_custom_call.1} parent=5 // pred_check_branch
        %210 = sbr.rel (%p207) target = $region12
      $region11: #{tpu_custom_call.1} parent=5 // pred_region
        %s211 = ssub.s32 %s19, 1
        // Predicated region
        $region13: #{tpu_custom_call.1} parent=11 // pred_check
          %p212 = pneg %p66
        $region14: #{tpu_custom_call.1} parent=11 // pred_check_branch
          %214 = sbr.rel (%p212) target = $region16
        $region15: #{tpu_custom_call.1} parent=11 // pred_region
          _
        $region16: #{tpu_custom_call.1} parent=11 // pred_fallthru
          _
        // Predicated region
        $region17: #{tpu_custom_call.1} parent=11 // pred_check
          %p215 = pneg %p87
        $region18: #{tpu_custom_call.1} parent=11 // pred_check_branch
          %217 = sbr.rel (%p215) target = $region20
        $region19: #{tpu_custom_call.1} parent=11 // pred_region
          _
        $region20: #{tpu_custom_call.1} parent=11 // pred_fallthru
          _
        // Predicated region
        $region21: #{tpu_custom_call.1} parent=11 // pred_check
          %p218 = pneg %p108
        $region22: #{tpu_custom_call.1} parent=11 // pred_check_branch
          %220 = sbr.rel (%p218) target = $region24
        $region23: #{tpu_custom_call.1} parent=11 // pred_region
          _
        $region24: #{tpu_custom_call.1} parent=11 // pred_fallthru
          _
        // Predicated region
        $region25: #{tpu_custom_call.1} parent=11 // pred_check
          %p221 = pneg %p129
        $region26: #{tpu_custom_call.1} parent=11 // pred_check_branch
          %223 = sbr.rel (%p221) target = $region28
        $region27: #{tpu_custom_call.1} parent=11 // pred_region
          _
        $region28: #{tpu_custom_call.1} parent=11 // pred_fallthru
          _
        // Predicated region
        $region29: #{tpu_custom_call.1} parent=11 // pred_check
          %p224 = pneg %p150
        $region30: #{tpu_custom_call.1} parent=11 // pred_check_branch
          %226 = sbr.rel (%p224) target = $region32
        $region31: #{tpu_custom_call.1} parent=11 // pred_region
          _
        $region32: #{tpu_custom_call.1} parent=11 // pred_fallthru
          _
        // Predicated region
        $region33: #{tpu_custom_call.1} parent=11 // pred_check
          %p227 = pneg %p171
        $region34: #{tpu_custom_call.1} parent=11 // pred_check_branch
          %229 = sbr.rel (%p227) target = $region36
        $region35: #{tpu_custom_call.1} parent=11 // pred_region
          _
        $region36: #{tpu_custom_call.1} parent=11 // pred_fallthru
          _
      $region12: #{tpu_custom_call.1} parent=5 // pred_fallthru
        _
      %p230 = scmp.lt.s32.totalorder %s19, 2
      // Predicated region
      $region37: #{tpu_custom_call.1} parent=5 // pred_check
        %p231 = pneg %p230
      $region38: #{tpu_custom_call.1} parent=5 // pred_check_branch
        %233 = sbr.rel (%p231) target = $region40
      $region39: #{tpu_custom_call.1} parent=5 // pred_region
        // Predicated region
        $region41: #{tpu_custom_call.1} parent=39 // pred_check
          %p234 = pneg %p39
        $region42: #{tpu_custom_call.1} parent=39 // pred_check_branch
          %236 = sbr.rel (%p234) target = $region44
        $region43: #{tpu_custom_call.1} parent=39 // pred_region
          %s237 = sand.u32 %s29, 1
          %s238 = scalar_lea.sflag [#allocation3], %s237
          %s239 = sand.u32 %s29, 1
          %s240 = smul.addr %s239, 64
          %s241 = scalar_lea.vmem [#allocation2], %s240
          %s242 = smul.u32 4, %s19
          %s244 = ssub.s32 1024, 1024
          %245 = vsyncadd %s238, %s244
          %s246 = smul.addr %s242, 128
          %s247 = scalar_lea.hbm %s0, %s246
          %s248 = sshll.u32 %s241, 4
          %s249 = int_to_ptr.vmem [resolvable:$true] %s248
          %254 = dma.hbm_to_vmem [thread:$0]  %s247, 1024, %s249, %s238, 1024, 512, 32
        $region44: #{tpu_custom_call.1} parent=39 // pred_fallthru
          _
      $region40: #{tpu_custom_call.1} parent=5 // pred_fallthru
        _
      %p255 = scmp.le.s32.totalorder 1, %s19
      %p256 = scmp.lt.s32.totalorder %s19, 3
      %p257 = pnand %p255, %p256
      %p258 = pneg %p257
      // Predicated region
      $region45: #{tpu_custom_call.1} parent=5 // pred_check
        _
      $region46: #{tpu_custom_call.1} parent=5 // pred_check_branch
        %260 = sbr.rel (%p257) target = $region48
      $region47: #{tpu_custom_call.1} parent=5 // pred_region
        %s261 = ssub.s32 %s19, 1
        %s262 = sand.u32 %s32, 1
        %s263 = scalar_lea.sflag [#allocation3], %s262
        %s264 = sand.u32 %s32, 1
        %s265 = smul.addr %s264, 64
        %s266 = scalar_lea.vmem [#allocation2], %s265
        // Predicated region
        $region49: #{tpu_custom_call.1} parent=47 // pred_check
          %p267 = pneg %p45
        $region50: #{tpu_custom_call.1} parent=47 // pred_check_branch
          %269 = sbr.rel (%p267) target = $region52
        $region51: #{tpu_custom_call.1} parent=47 // pred_region
          %270 = dma.done %s263, 1024
        $region52: #{tpu_custom_call.1} parent=47 // pred_fallthru
          _
        %s271 = sand.u32 %s32, 1
        %s272 = scalar_lea.sflag [#allocation3], %s271
        %s273 = sand.u32 %s32, 1
        %s274 = smul.addr %s273, 64
        %s275 = scalar_lea.vmem [#allocation2], %s274
        %p276 = pneg %p45
        %p277 = pneg %p42
        %p278 = pneg %p66
        %p279 = pneg %p63
        %p280 = pneg %p87
        %p281 = pneg %p84
        %p282 = pneg %p108
        %p283 = pneg %p105
        %p284 = pneg %p129
        %p285 = pneg %p126
        %p286 = pneg %p150
        %p287 = pneg %p147
        %p288 = pneg %p171
        %p289 = pneg %p168
        %p290 = pneg %p197
        %p291 = pneg %p194
        %s292 = sand.u32 %s184, 1
        %s293 = scalar_lea.sflag [#allocation4], %s292
        %s294 = sand.u32 %s184, 1
        %s295 = smul.addr %s294, 32
        %s296 = scalar_lea.vmem [#allocation5], %s295
        %s297 = smul.u32 4, %s24
        %s298 = smul.u32 4, %s24
        %v299 = vld [vmem:[%s266] sm:$0xff]
        %v300 = vld [vmem:[%s266 + $0x8] sm:$0xff]
        %v301 = vld [vmem:[%s266 + $0x10] sm:$0xff]
        %v302 = vld [vmem:[%s266 + $0x18] sm:$0xff]
        %v303 = vld [vmem:[%s266 + $0x20] sm:$0xff]
        %v304 = vld [vmem:[%s266 + $0x28] sm:$0xff]
        %v305 = vld [vmem:[%s266 + $0x30] sm:$0xff]
        %v306 = vld [vmem:[%s266 + $0x38] sm:$0xff]
        %v307 = vld [vmem:[%s1] sm:$0xff]
        %v308 = vld [vmem:[%s1 + $0x8] sm:$0xff]
        %v309 = vld [vmem:[%s1 + $0x10] sm:$0xff]
        %v310 = vld [vmem:[%s1 + $0x18] sm:$0xff]
        %v311 = vld [vmem:[%s2] sm:$0xff]
        %v312 = vld [vmem:[%s2 + $0x8] sm:$0xff]
        %v313 = vld [vmem:[%s2 + $0x10] sm:$0xff]
        %v314 = vld [vmem:[%s2 + $0x18] sm:$0xff]
        %316 = vset.pattern.permute.xlu0 0
        %317 = vperm.xlu0 %316, %v311
        %v318 = vpop.permute.xlu0 %317
        %321 = vset.pattern.permute.xlu0 0
        %322 = vperm.xlu0 %321, %v312
        %v323 = vpop.permute.xlu0 %322
        %326 = vset.pattern.permute.xlu0 0
        %327 = vperm.xlu0 %326, %v313
        %v328 = vpop.permute.xlu0 %327
        %331 = vset.pattern.permute.xlu0 0
        %332 = vperm.xlu0 %331, %v314
        %v333 = vpop.permute.xlu0 %332
        %vm335 = vcmask 130048
        %v337 = vsel %vm335, %v307, 0
        %v340 = vsel %vm335, %v308, 0
        %v343 = vsel %vm335, %v309, 0
        %v346 = vsel %vm335, %v310, 0
        %348 = vmatprep.subr.mxu0 %v300
        %349 = vmatpush1.msra.mxu0 %v299
        %350 = vmatprep.subr.mxu0 %v304
        %351 = vmatpush1.msra.mxu0 %v303
        %352 = vmatprep.subr.mxu0 0.0
        %353 = vmatpush1.msra.mxu0 0.0
        %354 = vmatprep.subr.mxu0 0.0
        %355 = vmatpush1.msra.mxu0 0.0
        %356 = vmatprep.subr.mxu0 0.0
        %357 = vmatpush1.msra.mxu0 0.0
        %358 = vmatprep.subr.mxu0 0.0
        %359 = vmatpush1.msra.mxu0 0.0
        %360 = vmatprep.subr.mxu0 0.0
        %361 = vmatpush1.msra.mxu0 0.0
        %362 = vmatprep.subr.mxu0 0.0
        %363 = vmatpush1.msra.mxu0 0.0
        %364 = vmatprep.subr.mxu0 0.0
        %365 = vmatpush1.msra.mxu0 0.0
        %366 = vmatprep.subr.mxu0 0.0
        %367 = vmatpush1.msra.mxu0 0.0
        %368 = vmatprep.subr.mxu0 0.0
        %369 = vmatpush1.msra.mxu0 0.0
        %370 = vmatprep.subr.mxu0 0.0
        %371 = vmatpush1.msra.mxu0 0.0
        %372 = vmatprep.subr.mxu0 0.0
        %373 = vmatpush1.msra.mxu0 0.0
        %374 = vmatprep.subr.mxu0 0.0
        %375 = vmatpush1.msra.mxu0 0.0
        %376 = vmatprep.subr.mxu0 0.0
        %377 = vmatpush1.msra.mxu0 0.0
        %378 = vmatprep.subr.mxu0 0.0
        %379 = vmatpush1.msra.mxu0 0.0
        %380 = vmatprep.subr.mxu0 0.0
        %381 = vmatpush1.msra.mxu0 0.0
        %382 = vmatprep.subr.mxu0 0.0
        %383 = vmatpush1.msra.mxu0 0.0
        %384 = vmatprep.subr.mxu0 0.0
        %385 = vmatpush1.msra.mxu0 0.0
        %386 = vmatprep.subr.mxu0 0.0
        %387 = vmatpush1.msra.mxu0 0.0
        %388 = vmatprep.subr.mxu0 0.0
        %389 = vmatpush1.msra.mxu0 0.0
        %390 = vmatprep.subr.mxu0 0.0
        %391 = vmatpush1.msra.mxu0 0.0
        %392 = vmatprep.subr.mxu0 0.0
        %393 = vmatpush1.msra.mxu0 0.0
        %394 = vmatprep.subr.mxu0 0.0
        %395 = vmatpush1.msra.mxu0 0.0
        %396 = vmatprep.subr.mxu0 0.0
        %397 = vmatpush1.msra.mxu0 0.0
        %398 = vmatprep.subr.mxu0 0.0
        %399 = vmatpush1.msra.mxu0 0.0
        %400 = vmatprep.subr.mxu0 0.0
        %401 = vmatpush1.msra.mxu0 0.0
        %402 = vmatprep.subr.mxu0 0.0
        %403 = vmatpush1.msra.mxu0 0.0
        %404 = vmatprep.subr.mxu0 0.0
        %405 = vmatpush1.msra.mxu0 0.0
        %406 = vmatprep.subr.mxu0 0.0
        %407 = vmatpush1.msra.mxu0 0.0
        %408 = vmatprep.subr.mxu0 0.0
        %409 = vmatpush1.msra.mxu0 0.0
        %410 = vmatprep.subr.mxu0 0.0
        %411 = vmatpush1.msra.mxu0 0.0
        %412 = vmatprep.mubr.f32.mxu0 0.0
        %413 = vmatmul.mubr.f32.gmra.mrb[0].mxu0 %v337
        %v414 = vpop.f32.mrb[0].mxu0
        %v415 = vadd.f32 %v318, %v414
        %v416 = vpop.f32.mrb[0].mxu0
        %v417 = vadd.f32 %v318, %v416
        %418 = vmatprep.mubr.f32.mxu0 0.0
        %419 = vmatmul.mubr.f32.gmra.mrb[0].mxu0 %v340
        %v420 = vpop.f32.mrb[0].mxu0
        %v421 = vadd.f32 %v323, %v420
        %v422 = vpop.f32.mrb[0].mxu0
        %v423 = vadd.f32 %v323, %v422
        %424 = vmatprep.mubr.f32.mxu0 0.0
        %425 = vmatmul.mubr.f32.gmra.mrb[0].mxu0 %v343
        %v426 = vpop.f32.mrb[0].mxu0
        %v427 = vadd.f32 %v328, %v426
        %v428 = vpop.f32.mrb[0].mxu0
        %v429 = vadd.f32 %v328, %v428
        %430 = vmatprep.mubr.f32.mxu0 0.0
        %431 = vmatmul.mubr.f32.gmra.mrb[0].mxu0 %v346
        %v432 = vpop.f32.mrb[0].mxu0
        %v433 = vadd.f32 %v333, %v432
        %v434 = vpop.f32.mrb[0].mxu0
        %v435 = vadd.f32 %v333, %v434
        %436 = vdwg.mxu0
        %437 = vmatprep.subr.mxu0 %v302
        %438 = vmatpush1.msra.mxu0 %v301
        %439 = vmatprep.subr.mxu0 %v306
        %440 = vmatpush1.msra.mxu0 %v305
        %441 = vmatprep.subr.mxu0 0.0
        %442 = vmatpush1.msra.mxu0 0.0
        %443 = vmatprep.subr.mxu0 0.0
        %444 = vmatpush1.msra.mxu0 0.0
        %445 = vmatprep.subr.mxu0 0.0
        %446 = vmatpush1.msra.mxu0 0.0
        %447 = vmatprep.subr.mxu0 0.0
        %448 = vmatpush1.msra.mxu0 0.0
        %449 = vmatprep.subr.mxu0 0.0
        %450 = vmatpush1.msra.mxu0 0.0
        %451 = vmatprep.subr.mxu0 0.0
        %452 = vmatpush1.msra.mxu0 0.0
        %453 = vmatprep.subr.mxu0 0.0
        %454 = vmatpush1.msra.mxu0 0.0
        %455 = vmatprep.subr.mxu0 0.0
        %456 = vmatpush1.msra.mxu0 0.0
        %457 = vmatprep.subr.mxu0 0.0
        %458 = vmatpush1.msra.mxu0 0.0
        %459 = vmatprep.subr.mxu0 0.0
        %460 = vmatpush1.msra.mxu0 0.0
        %461 = vmatprep.subr.mxu0 0.0
        %462 = vmatpush1.msra.mxu0 0.0
        %463 = vmatprep.subr.mxu0 0.0
        %464 = vmatpush1.msra.mxu0 0.0
        %465 = vmatprep.subr.mxu0 0.0
        %466 = vmatpush1.msra.mxu0 0.0
        %467 = vmatprep.subr.mxu0 0.0
        %468 = vmatpush1.msra.mxu0 0.0
        %469 = vmatprep.subr.mxu0 0.0
        %470 = vmatpush1.msra.mxu0 0.0
        %471 = vmatprep.subr.mxu0 0.0
        %472 = vmatpush1.msra.mxu0 0.0
        %473 = vmatprep.subr.mxu0 0.0
        %474 = vmatpush1.msra.mxu0 0.0
        %475 = vmatprep.subr.mxu0 0.0
        %476 = vmatpush1.msra.mxu0 0.0
        %477 = vmatprep.subr.mxu0 0.0
        %478 = vmatpush1.msra.mxu0 0.0
        %479 = vmatprep.subr.mxu0 0.0
        %480 = vmatpush1.msra.mxu0 0.0
        %481 = vmatprep.subr.mxu0 0.0
        %482 = vmatpush1.msra.mxu0 0.0
        %483 = vmatprep.subr.mxu0 0.0
        %484 = vmatpush1.msra.mxu0 0.0
        %485 = vmatprep.subr.mxu0 0.0
        %486 = vmatpush1.msra.mxu0 0.0
        %487 = vmatprep.subr.mxu0 0.0
        %488 = vmatpush1.msra.mxu0 0.0
        %489 = vmatprep.subr.mxu0 0.0
        %490 = vmatpush1.msra.mxu0 0.0
        %491 = vmatprep.subr.mxu0 0.0
        %492 = vmatpush1.msra.mxu0 0.0
        %493 = vmatprep.subr.mxu0 0.0
        %494 = vmatpush1.msra.mxu0 0.0
        %495 = vmatprep.subr.mxu0 0.0
        %496 = vmatpush1.msra.mxu0 0.0
        %497 = vmatprep.subr.mxu0 0.0
        %498 = vmatpush1.msra.mxu0 0.0
        %499 = vmatprep.subr.mxu0 0.0
        %500 = vmatpush1.msra.mxu0 0.0
        %501 = vmatprep.mubr.f32.mxu0 0.0
        %502 = vmatmul.mubr.f32.gmra.mrb[0].mxu0 %v337
        %v503 = vpop.f32.mrb[0].mxu0
        %v504 = vadd.f32 %v318, %v503
        %v505 = vpop.f32.mrb[0].mxu0
        %v506 = vadd.f32 %v318, %v505
        %507 = vmatprep.mubr.f32.mxu0 0.0
        %508 = vmatmul.mubr.f32.gmra.mrb[0].mxu0 %v340
        %v509 = vpop.f32.mrb[0].mxu0
        %v510 = vadd.f32 %v323, %v509
        %v511 = vpop.f32.mrb[0].mxu0
        %v512 = vadd.f32 %v323, %v511
        %513 = vmatprep.mubr.f32.mxu0 0.0
        %514 = vmatmul.mubr.f32.gmra.mrb[0].mxu0 %v343
        %v515 = vpop.f32.mrb[0].mxu0
        %v516 = vadd.f32 %v328, %v515
        %v517 = vpop.f32.mrb[0].mxu0
        %v518 = vadd.f32 %v328, %v517
        %519 = vmatprep.mubr.f32.mxu0 0.0
        %520 = vmatmul.mubr.f32.gmra.mrb[0].mxu0 %v346
        %v521 = vpop.f32.mrb[0].mxu0
        %v522 = vadd.f32 %v333, %v521
        %v523 = vpop.f32.mrb[0].mxu0
        %v524 = vadd.f32 %v333, %v523
        %525 = vdwg.mxu0
        %v526 = vmax.f32 %v415, 0.0
        %v527 = vmax.f32 %v417, 0.0
        %v528 = vmax.f32 %v504, 0.0
        %v529 = vmax.f32 %v506, 0.0
        %v530 = vmax.f32 %v421, 0.0
        %v531 = vmax.f32 %v423, 0.0
        %v532 = vmax.f32 %v510, 0.0
        %v533 = vmax.f32 %v512, 0.0
        %v534 = vmax.f32 %v427, 0.0
        %v535 = vmax.f32 %v429, 0.0
        %v536 = vmax.f32 %v516, 0.0
        %v537 = vmax.f32 %v518, 0.0
        %v538 = vmax.f32 %v433, 0.0
        %v539 = vmax.f32 %v435, 0.0
        %v540 = vmax.f32 %v522, 0.0
        %v541 = vmax.f32 %v524, 0.0
        %v542 = vld [vmem:[%s3] sm:$0xff]
        %v543 = vld [vmem:[%s3 + $0x8] sm:$0xff]
        %v544 = vld [vmem:[%s3 + $0x10] sm:$0xff]
        %v545 = vld [vmem:[%s3 + $0x18] sm:$0xff]
        %v546 = vld [vmem:[%s4] sm:$0xff]
        %v547 = vld [vmem:[%s4 + $0x8] sm:$0xff]
        %v548 = vld [vmem:[%s4 + $0x10] sm:$0xff]
        %v549 = vld [vmem:[%s4 + $0x18] sm:$0xff]
        %551 = vset.pattern.permute.xlu0 0
        %552 = vperm.xlu0 %551, %v546
        %v553 = vpop.permute.xlu0 %552
        %556 = vset.pattern.permute.xlu0 0
        %557 = vperm.xlu0 %556, %v547
        %v558 = vpop.permute.xlu0 %557
        %561 = vset.pattern.permute.xlu0 0
        %562 = vperm.xlu0 %561, %v548
        %v563 = vpop.permute.xlu0 %562
        %566 = vset.pattern.permute.xlu0 0
        %567 = vperm.xlu0 %566, %v549
        %v568 = vpop.permute.xlu0 %567
        %vm570 = vcmask 261120
        %v572 = vsel %vm570, %v542, 0
        %v575 = vsel %vm570, %v543, 0
        %v578 = vsel %vm570, %v544, 0
        %v581 = vsel %vm570, %v545, 0
        %583 = vmatprep.subr.mxu0 %v527
        %584 = vmatpush1.msra.mxu0 %v526
        %585 = vmatprep.subr.mxu0 %v531
        %586 = vmatpush1.msra.mxu0 %v530
        %587 = vmatprep.subr.mxu0 %v535
        %588 = vmatpush1.msra.mxu0 %v534
        %589 = vmatprep.subr.mxu0 %v539
        %590 = vmatpush1.msra.mxu0 %v538
        %591 = vmatprep.subr.mxu0 0.0
        %592 = vmatpush1.msra.mxu0 0.0
        %593 = vmatprep.subr.mxu0 0.0
        %594 = vmatpush1.msra.mxu0 0.0
        %595 = vmatprep.subr.mxu0 0.0
        %596 = vmatpush1.msra.mxu0 0.0
        %597 = vmatprep.subr.mxu0 0.0
        %598 = vmatpush1.msra.mxu0 0.0
        %599 = vmatprep.subr.mxu0 0.0
        %600 = vmatpush1.msra.mxu0 0.0
        %601 = vmatprep.subr.mxu0 0.0
        %602 = vmatpush1.msra.mxu0 0.0
        %603 = vmatprep.subr.mxu0 0.0
        %604 = vmatpush1.msra.mxu0 0.0
        %605 = vmatprep.subr.mxu0 0.0
        %606 = vmatpush1.msra.mxu0 0.0
        %607 = vmatprep.subr.mxu0 0.0
        %608 = vmatpush1.msra.mxu0 0.0
        %609 = vmatprep.subr.mxu0 0.0
        %610 = vmatpush1.msra.mxu0 0.0
        %611 = vmatprep.subr.mxu0 0.0
        %612 = vmatpush1.msra.mxu0 0.0
        %613 = vmatprep.subr.mxu0 0.0
        %614 = vmatpush1.msra.mxu0 0.0
        %615 = vmatprep.subr.mxu0 0.0
        %616 = vmatpush1.msra.mxu0 0.0
        %617 = vmatprep.subr.mxu0 0.0
        %618 = vmatpush1.msra.mxu0 0.0
        %619 = vmatprep.subr.mxu0 0.0
        %620 = vmatpush1.msra.mxu0 0.0
        %621 = vmatprep.subr.mxu0 0.0
        %622 = vmatpush1.msra.mxu0 0.0
        %623 = vmatprep.subr.mxu0 0.0
        %624 = vmatpush1.msra.mxu0 0.0
        %625 = vmatprep.subr.mxu0 0.0
        %626 = vmatpush1.msra.mxu0 0.0
        %627 = vmatprep.subr.mxu0 0.0
        %628 = vmatpush1.msra.mxu0 0.0
        %629 = vmatprep.subr.mxu0 0.0
        %630 = vmatpush1.msra.mxu0 0.0
        %631 = vmatprep.subr.mxu0 0.0
        %632 = vmatpush1.msra.mxu0 0.0
        %633 = vmatprep.subr.mxu0 0.0
        %634 = vmatpush1.msra.mxu0 0.0
        %635 = vmatprep.subr.mxu0 0.0
        %636 = vmatpush1.msra.mxu0 0.0
        %637 = vmatprep.subr.mxu0 0.0
        %638 = vmatpush1.msra.mxu0 0.0
        %639 = vmatprep.subr.mxu0 0.0
        %640 = vmatpush1.msra.mxu0 0.0
        %641 = vmatprep.subr.mxu0 0.0
        %642 = vmatpush1.msra.mxu0 0.0
        %643 = vmatprep.subr.mxu0 0.0
        %644 = vmatpush1.msra.mxu0 0.0
        %645 = vmatprep.subr.mxu0 0.0
        %646 = vmatpush1.msra.mxu0 0.0
        %647 = vmatprep.mubr.f32.mxu0 0.0
        %648 = vmatmul.mubr.f32.gmra.mrb[0].mxu0 %v572
        %v649 = vpop.f32.mrb[0].mxu0
        %v650 = vadd.f32 %v553, %v649
        %v651 = vpop.f32.mrb[0].mxu0
        %v652 = vadd.f32 %v553, %v651
        %653 = vmatprep.mubr.f32.mxu0 0.0
        %654 = vmatmul.mubr.f32.gmra.mrb[0].mxu0 %v575
        %v655 = vpop.f32.mrb[0].mxu0
        %v656 = vadd.f32 %v558, %v655
        %v657 = vpop.f32.mrb[0].mxu0
        %v658 = vadd.f32 %v558, %v657
        %659 = vmatprep.mubr.f32.mxu0 0.0
        %660 = vmatmul.mubr.f32.gmra.mrb[0].mxu0 %v578
        %v661 = vpop.f32.mrb[0].mxu0
        %v662 = vadd.f32 %v563, %v661
        %v663 = vpop.f32.mrb[0].mxu0
        %v664 = vadd.f32 %v563, %v663
        %665 = vmatprep.mubr.f32.mxu0 0.0
        %666 = vmatmul.mubr.f32.gmra.mrb[0].mxu0 %v581
        %v667 = vpop.f32.mrb[0].mxu0
        %v668 = vadd.f32 %v568, %v667
        %v669 = vpop.f32.mrb[0].mxu0
        %v670 = vadd.f32 %v568, %v669
        %671 = vdwg.mxu0
        %672 = vmatprep.subr.mxu0 %v529
        %673 = vmatpush1.msra.mxu0 %v528
        %674 = vmatprep.subr.mxu0 %v533
        %675 = vmatpush1.msra.mxu0 %v532
        %676 = vmatprep.subr.mxu0 %v537
        %677 = vmatpush1.msra.mxu0 %v536
        %678 = vmatprep.subr.mxu0 %v541
        %679 = vmatpush1.msra.mxu0 %v540
        %680 = vmatprep.subr.mxu0 0.0
        %681 = vmatpush1.msra.mxu0 0.0
        %682 = vmatprep.subr.mxu0 0.0
        %683 = vmatpush1.msra.mxu0 0.0
        %684 = vmatprep.subr.mxu0 0.0
        %685 = vmatpush1.msra.mxu0 0.0
        %686 = vmatprep.subr.mxu0 0.0
        %687 = vmatpush1.msra.mxu0 0.0
        %688 = vmatprep.subr.mxu0 0.0
        %689 = vmatpush1.msra.mxu0 0.0
        %690 = vmatprep.subr.mxu0 0.0
        %691 = vmatpush1.msra.mxu0 0.0
        %692 = vmatprep.subr.mxu0 0.0
        %693 = vmatpush1.msra.mxu0 0.0
        %694 = vmatprep.subr.mxu0 0.0
        %695 = vmatpush1.msra.mxu0 0.0
        %696 = vmatprep.subr.mxu0 0.0
        %697 = vmatpush1.msra.mxu0 0.0
        %698 = vmatprep.subr.mxu0 0.0
        %699 = vmatpush1.msra.mxu0 0.0
        %700 = vmatprep.subr.mxu0 0.0
        %701 = vmatpush1.msra.mxu0 0.0
        %702 = vmatprep.subr.mxu0 0.0
        %703 = vmatpush1.msra.mxu0 0.0
        %704 = vmatprep.subr.mxu0 0.0
        %705 = vmatpush1.msra.mxu0 0.0
        %706 = vmatprep.subr.mxu0 0.0
        %707 = vmatpush1.msra.mxu0 0.0
        %708 = vmatprep.subr.mxu0 0.0
        %709 = vmatpush1.msra.mxu0 0.0
        %710 = vmatprep.subr.mxu0 0.0
        %711 = vmatpush1.msra.mxu0 0.0
        %712 = vmatprep.subr.mxu0 0.0
        %713 = vmatpush1.msra.mxu0 0.0
        %714 = vmatprep.subr.mxu0 0.0
        %715 = vmatpush1.msra.mxu0 0.0
        %716 = vmatprep.subr.mxu0 0.0
        %717 = vmatpush1.msra.mxu0 0.0
        %718 = vmatprep.subr.mxu0 0.0
        %719 = vmatpush1.msra.mxu0 0.0
        %720 = vmatprep.subr.mxu0 0.0
        %721 = vmatpush1.msra.mxu0 0.0
        %722 = vmatprep.subr.mxu0 0.0
        %723 = vmatpush1.msra.mxu0 0.0
        %724 = vmatprep.subr.mxu0 0.0
        %725 = vmatpush1.msra.mxu0 0.0
        %726 = vmatprep.subr.mxu0 0.0
        %727 = vmatpush1.msra.mxu0 0.0
        %728 = vmatprep.subr.mxu0 0.0
        %729 = vmatpush1.msra.mxu0 0.0
        %730 = vmatprep.subr.mxu0 0.0
        %731 = vmatpush1.msra.mxu0 0.0
        %732 = vmatprep.subr.mxu0 0.0
        %733 = vmatpush1.msra.mxu0 0.0
        %734 = vmatprep.subr.mxu0 0.0
        %735 = vmatpush1.msra.mxu0 0.0
        %736 = vmatprep.mubr.f32.mxu0 0.0
        %737 = vmatmul.mubr.f32.gmra.mrb[0].mxu0 %v572
        %v738 = vpop.f32.mrb[0].mxu0
        %v739 = vadd.f32 %v553, %v738
        %v740 = vpop.f32.mrb[0].mxu0
        %v741 = vadd.f32 %v553, %v740
        %742 = vmatprep.mubr.f32.mxu0 0.0
        %743 = vmatmul.mubr.f32.gmra.mrb[0].mxu0 %v575
        %v744 = vpop.f32.mrb[0].mxu0
        %v745 = vadd.f32 %v558, %v744
        %v746 = vpop.f32.mrb[0].mxu0
        %v747 = vadd.f32 %v558, %v746
        %748 = vmatprep.mubr.f32.mxu0 0.0
        %749 = vmatmul.mubr.f32.gmra.mrb[0].mxu0 %v578
        %v750 = vpop.f32.mrb[0].mxu0
        %v751 = vadd.f32 %v563, %v750
        %v752 = vpop.f32.mrb[0].mxu0
        %v753 = vadd.f32 %v563, %v752
        %754 = vmatprep.mubr.f32.mxu0 0.0
        %755 = vmatmul.mubr.f32.gmra.mrb[0].mxu0 %v581
        %v756 = vpop.f32.mrb[0].mxu0
        %v757 = vadd.f32 %v568, %v756
        %v758 = vpop.f32.mrb[0].mxu0
        %v759 = vadd.f32 %v568, %v758
        %760 = vdwg.mxu0
        %v761 = vmax.f32 %v650, 0.0
        %v762 = vmax.f32 %v652, 0.0
        %v763 = vmax.f32 %v739, 0.0
        %v764 = vmax.f32 %v741, 0.0
        %v765 = vmax.f32 %v656, 0.0
        %v766 = vmax.f32 %v658, 0.0
        %v767 = vmax.f32 %v745, 0.0
        %v768 = vmax.f32 %v747, 0.0
        %v769 = vmax.f32 %v662, 0.0
        %v770 = vmax.f32 %v664, 0.0
        %v771 = vmax.f32 %v751, 0.0
        %v772 = vmax.f32 %v753, 0.0
        %v773 = vmax.f32 %v668, 0.0
        %v774 = vmax.f32 %v670, 0.0
        %v775 = vmax.f32 %v757, 0.0
        %v776 = vmax.f32 %v759, 0.0
        %v777 = vld [vmem:[%s5] sm:$0xff]
        %v778 = vld [vmem:[%s6] sm:$0xff]
        %780 = vset.pattern.permute.xlu0 0
        %781 = vperm.xlu0 %780, %v778
        %v782 = vpop.permute.xlu0 %781
        %v785 = vsel %vm570, %v777, 0
        %787 = vmatprep.subr.mxu0 %v762
        %788 = vmatpush1.msra.mxu0 %v761
        %789 = vmatprep.subr.mxu0 %v766
        %790 = vmatpush1.msra.mxu0 %v765
        %791 = vmatprep.subr.mxu0 %v770
        %792 = vmatpush1.msra.mxu0 %v769
        %793 = vmatprep.subr.mxu0 %v774
        %794 = vmatpush1.msra.mxu0 %v773
        %795 = vmatprep.subr.mxu0 0.0
        %796 = vmatpush1.msra.mxu0 0.0
        %797 = vmatprep.subr.mxu0 0.0
        %798 = vmatpush1.msra.mxu0 0.0
        %799 = vmatprep.subr.mxu0 0.0
        %800 = vmatpush1.msra.mxu0 0.0
        %801 = vmatprep.subr.mxu0 0.0
        %802 = vmatpush1.msra.mxu0 0.0
        %803 = vmatprep.subr.mxu0 0.0
        %804 = vmatpush1.msra.mxu0 0.0
        %805 = vmatprep.subr.mxu0 0.0
        %806 = vmatpush1.msra.mxu0 0.0
        %807 = vmatprep.subr.mxu0 0.0
        %808 = vmatpush1.msra.mxu0 0.0
        %809 = vmatprep.subr.mxu0 0.0
        %810 = vmatpush1.msra.mxu0 0.0
        %811 = vmatprep.subr.mxu0 0.0
        %812 = vmatpush1.msra.mxu0 0.0
        %813 = vmatprep.subr.mxu0 0.0
        %814 = vmatpush1.msra.mxu0 0.0
        %815 = vmatprep.subr.mxu0 0.0
        %816 = vmatpush1.msra.mxu0 0.0
        %817 = vmatprep.subr.mxu0 0.0
        %818 = vmatpush1.msra.mxu0 0.0
        %819 = vmatprep.subr.mxu0 0.0
        %820 = vmatpush1.msra.mxu0 0.0
        %821 = vmatprep.subr.mxu0 0.0
        %822 = vmatpush1.msra.mxu0 0.0
        %823 = vmatprep.subr.mxu0 0.0
        %824 = vmatpush1.msra.mxu0 0.0
        %825 = vmatprep.subr.mxu0 0.0
        %826 = vmatpush1.msra.mxu0 0.0
        %827 = vmatprep.subr.mxu0 0.0
        %828 = vmatpush1.msra.mxu0 0.0
        %829 = vmatprep.subr.mxu0 0.0
        %830 = vmatpush1.msra.mxu0 0.0
        %831 = vmatprep.subr.mxu0 0.0
        %832 = vmatpush1.msra.mxu0 0.0
        %833 = vmatprep.subr.mxu0 0.0
        %834 = vmatpush1.msra.mxu0 0.0
        %835 = vmatprep.subr.mxu0 0.0
        %836 = vmatpush1.msra.mxu0 0.0
        %837 = vmatprep.subr.mxu0 0.0
        %838 = vmatpush1.msra.mxu0 0.0
        %839 = vmatprep.subr.mxu0 0.0
        %840 = vmatpush1.msra.mxu0 0.0
        %841 = vmatprep.subr.mxu0 0.0
        %842 = vmatpush1.msra.mxu0 0.0
        %843 = vmatprep.subr.mxu0 0.0
        %844 = vmatpush1.msra.mxu0 0.0
        %845 = vmatprep.subr.mxu0 0.0
        %846 = vmatpush1.msra.mxu0 0.0
        %847 = vmatprep.subr.mxu0 0.0
        %848 = vmatpush1.msra.mxu0 0.0
        %849 = vmatprep.subr.mxu0 0.0
        %850 = vmatpush1.msra.mxu0 0.0
        %851 = vmatprep.mubr.f32.mxu0 0.0
        %852 = vmatmul.mubr.f32.gmra.mrb[0].mxu0 %v785
        %v853 = vpop.f32.mrb[0].mxu0
        %v854 = vadd.f32 %v782, %v853
        %v855 = vpop.f32.mrb[0].mxu0
        %v856 = vadd.f32 %v782, %v855
        %857 = vdwg.mxu0
        %858 = vmatprep.subr.mxu0 %v764
        %859 = vmatpush1.msra.mxu0 %v763
        %860 = vmatprep.subr.mxu0 %v768
        %861 = vmatpush1.msra.mxu0 %v767
        %862 = vmatprep.subr.mxu0 %v772
        %863 = vmatpush1.msra.mxu0 %v771
        %864 = vmatprep.subr.mxu0 %v776
        %865 = vmatpush1.msra.mxu0 %v775
        %866 = vmatprep.subr.mxu0 0.0
        %867 = vmatpush1.msra.mxu0 0.0
        %868 = vmatprep.subr.mxu0 0.0
        %869 = vmatpush1.msra.mxu0 0.0
        %870 = vmatprep.subr.mxu0 0.0
        %871 = vmatpush1.msra.mxu0 0.0
        %872 = vmatprep.subr.mxu0 0.0
        %873 = vmatpush1.msra.mxu0 0.0
        %874 = vmatprep.subr.mxu0 0.0
        %875 = vmatpush1.msra.mxu0 0.0
        %876 = vmatprep.subr.mxu0 0.0
        %877 = vmatpush1.msra.mxu0 0.0
        %878 = vmatprep.subr.mxu0 0.0
        %879 = vmatpush1.msra.mxu0 0.0
        %880 = vmatprep.subr.mxu0 0.0
        %881 = vmatpush1.msra.mxu0 0.0
        %882 = vmatprep.subr.mxu0 0.0
        %883 = vmatpush1.msra.mxu0 0.0
        %884 = vmatprep.subr.mxu0 0.0
        %885 = vmatpush1.msra.mxu0 0.0
        %886 = vmatprep.subr.mxu0 0.0
        %887 = vmatpush1.msra.mxu0 0.0
        %888 = vmatprep.subr.mxu0 0.0
        %889 = vmatpush1.msra.mxu0 0.0
        %890 = vmatprep.subr.mxu0 0.0
        %891 = vmatpush1.msra.mxu0 0.0
        %892 = vmatprep.subr.mxu0 0.0
        %893 = vmatpush1.msra.mxu0 0.0
        %894 = vmatprep.subr.mxu0 0.0
        %895 = vmatpush1.msra.mxu0 0.0
        %896 = vmatprep.subr.mxu0 0.0
        %897 = vmatpush1.msra.mxu0 0.0
        %898 = vmatprep.subr.mxu0 0.0
        %899 = vmatpush1.msra.mxu0 0.0
        %900 = vmatprep.subr.mxu0 0.0
        %901 = vmatpush1.msra.mxu0 0.0
        %902 = vmatprep.subr.mxu0 0.0
        %903 = vmatpush1.msra.mxu0 0.0
        %904 = vmatprep.subr.mxu0 0.0
        %905 = vmatpush1.msra.mxu0 0.0
        %906 = vmatprep.subr.mxu0 0.0
        %907 = vmatpush1.msra.mxu0 0.0
        %908 = vmatprep.subr.mxu0 0.0
        %909 = vmatpush1.msra.mxu0 0.0
        %910 = vmatprep.subr.mxu0 0.0
        %911 = vmatpush1.msra.mxu0 0.0
        %912 = vmatprep.subr.mxu0 0.0
        %913 = vmatpush1.msra.mxu0 0.0
        %914 = vmatprep.subr.mxu0 0.0
        %915 = vmatpush1.msra.mxu0 0.0
        %916 = vmatprep.subr.mxu0 0.0
        %917 = vmatpush1.msra.mxu0 0.0
        %918 = vmatprep.subr.mxu0 0.0
        %919 = vmatpush1.msra.mxu0 0.0
        %920 = vmatprep.subr.mxu0 0.0
        %921 = vmatpush1.msra.mxu0 0.0
        %922 = vmatprep.mubr.f32.mxu0 0.0
        %923 = vmatmul.mubr.f32.gmra.mrb[0].mxu0 %v785
        %v924 = vpop.f32.mrb[0].mxu0
        %v925 = vadd.f32 %v782, %v924
        %v926 = vpop.f32.mrb[0].mxu0
        %v927 = vadd.f32 %v782, %v926
        %928 = vdwg.mxu0
        %929 = vst [vmem:[%s296] sm:$0xff] %v854
        %930 = vst [vmem:[%s296 + $0x8] sm:$0xff] %v856
        %931 = vst [vmem:[%s296 + $0x10] sm:$0xff] %v925
        %932 = vst [vmem:[%s296 + $0x18] sm:$0xff] %v927
        %s933 = sand.u32 %s184, 1
        %s934 = scalar_lea.sflag [#allocation4], %s933
        %s935 = sand.u32 %s184, 1
        %s936 = smul.addr %s935, 32
        %s937 = scalar_lea.vmem [#allocation5], %s936
        // Predicated region
        $region53: #{tpu_custom_call.1} parent=47 // pred_check
          %p938 = pneg %p194
        $region54: #{tpu_custom_call.1} parent=47 // pred_check_branch
          %940 = sbr.rel (%p938) target = $region56
        $region55: #{tpu_custom_call.1} parent=47 // pred_region
          %s941 = smul.u32 4, %s24
          %s943 = ssub.s32 512, 512
          %944 = vsyncadd %s934, %s943
          %s945 = smul.addr %s941, 128
          %s946 = scalar_lea.hbm %s7, %s945
          %s948 = sshll.u32 %s937, 4
          %s949 = int_to_ptr.vmem [resolvable:$true] %s948
          %951 = dma.vmem_to_hbm [thread:$0]  %s949, 512, %s946, %s934
        $region56: #{tpu_custom_call.1} parent=47 // pred_fallthru
          _
      $region48: #{tpu_custom_call.1} parent=5 // pred_fallthru
        _
      %p952 = scmp.le.s32.totalorder 2, %s19
      // Predicated region
      $region57: #{tpu_custom_call.1} parent=5 // pred_check
        %p953 = pneg %p952
      $region58: #{tpu_custom_call.1} parent=5 // pred_check_branch
        %955 = sbr.rel (%p953) target = $region60
      $region59: #{tpu_custom_call.1} parent=5 // pred_region
        %s956 = ssub.s32 %s19, 2
        // Predicated region
        $region61: #{tpu_custom_call.1} parent=59 // pred_check
          %p957 = pneg %p200
        $region62: #{tpu_custom_call.1} parent=59 // pred_check_branch
          %959 = sbr.rel (%p957) target = $region64
        $region63: #{tpu_custom_call.1} parent=59 // pred_region
          %s960 = sand.u32 %s185, 1
          %s961 = scalar_lea.sflag [#allocation4], %s960
          %s962 = sand.u32 %s185, 1
          %s963 = smul.addr %s962, 32
          %s964 = scalar_lea.vmem [#allocation5], %s963
          %965 = dma.done %s961, 512
        $region64: #{tpu_custom_call.1} parent=59 // pred_fallthru
          _
      $region60: #{tpu_custom_call.1} parent=5 // pred_fallthru
        _
    $region6: #{tpu_custom_call.1} parent=1 // loop_footer
      %s23 = sadd.s32 1, %s19
    $region7: #{tpu_custom_call.1} parent=1 // loop_footer_branch
      %18 = sbr.rel target = $region3
    $region8: #{tpu_custom_call.1} parent=1 // loop_exit
      _
    %966 = vsyncpa [#allocation3], 1
    %s967 = scalar_lea.sflag [#allocation3], 1
    %968 = vsyncpa %s967, 1
    %969 = vsyncpa [#allocation4], 1
    %s970 = scalar_lea.sflag [#allocation4], 1
    %971 = vsyncpa %s970, 1

</llo_original>
